<compile_context>
chip_gen: v7x
topology: tpu7x:2x2x1
jax: 0.10.0
libtpu: 0.0.40
codegen_flags: <defaults>
</compile_context>

<pallas_src>
import functools

import jax
import jax.numpy as jnp
from jax.experimental import pallas as pl
from jax.experimental.pallas import tpu as pltpu


def _round_up(n: int, m: int) -> int:
    return ((n + m - 1) // m) * m


def _vmem_budget_bytes() -> int:
    """Physical VMEM per core with headroom for compiler scratch (~22%)."""
    cap = 64 * 1024 * 1024  # conservative fallback (v7x per-TC)
    try:
        info = pltpu.get_tpu_info()
        cap = int(getattr(info, "vmem_capacity_bytes", cap))
    except Exception:
        pass
    return (cap * 25) // 32  # 128 MiB -> 100 MiB, 64 MiB -> 50 MiB


def _fusion_kernel(a_ref, v_ref, w1a_ref, w1v_ref, b1_ref, w2_ref, b2_ref, o_ref):
    # a: (TB, A), v: (TB, V), w1a: (A, Op), w1v: (V, Op), b1: (1, Op),
    # w2: (Op, Op), b2: (1, Op), o: (TB, Op).
    # Fused concat: cat([a, v], 1) @ W1 == a @ W1[:A] + v @ W1[A:].
    a = a_ref[...].astype(w1a_ref.dtype)          # cast in-kernel (no extra HBM pass)
    v = v_ref[...].astype(w1v_ref.dtype)
    h = (jnp.dot(a, w1a_ref[...], preferred_element_type=jnp.float32)
         + jnp.dot(v, w1v_ref[...], preferred_element_type=jnp.float32)
         + b1_ref[...])                            # bias on f32 accumulator (VPU)
    h = jnp.maximum(h, 0.0)                        # ReLU
    o = jnp.dot(h.astype(w2_ref.dtype), w2_ref[...],
                preferred_element_type=jnp.float32) + b2_ref[...]
    o_ref[...] = o.astype(o_ref.dtype)


def prepare_fusion_params(w1, b1, w2, b2, audio_dim, *, compute_dtype=jnp.bfloat16):
    """Pad / cast the weights ONCE (hoisted out of the per-step path).

    w1: (A+V, O) already transposed for x @ W (PyTorch Linear stores (out, in),
    so pass linear.weight.T), b1: (O,), w2: (O, O), b2: (O,).
    Returns a tuple of device arrays consumed by `fused_forward`.
    """
    A = int(audio_dim)
    in1, O = w1.shape
    V = in1 - A
    cdtype = jnp.dtype(compute_dtype)
    O_p = _round_up(O, 128)  # lane-dense hidden/output dim (full vst, no masked stores)

    if O_p == O:
        w1a = w1[:A].astype(cdtype)
        w1v = w1[A:].astype(cdtype)
        w2p = w2.astype(cdtype)
        b1p = b1.astype(jnp.float32).reshape(1, O)
        b2p = b2.astype(jnp.float32).reshape(1, O)
    else:
        w1a = jnp.zeros((A, O_p), cdtype).at[:, :O].set(w1[:A].astype(cdtype))
        w1v = jnp.zeros((V, O_p), cdtype).at[:, :O].set(w1[A:].astype(cdtype))
        w2p = jnp.zeros((O_p, O_p), cdtype).at[:O, :O].set(w2.astype(cdtype))
        b1p = jnp.zeros((1, O_p), jnp.float32).at[:, :O].set(b1.astype(jnp.float32))
        b2p = jnp.zeros((1, O_p), jnp.float32).at[:, :O].set(b2.astype(jnp.float32))
    return (w1a, w1v, b1p, w2p, b2p)


def fused_forward(audio, visual, params, *, output_dim, out_dtype=None, block_b=None):
    """Hot path: run the fused kernel with pre-prepared (padded, cast) params."""
    w1a, w1v, b1p, w2p, b2p = params
    B, A = audio.shape
    Bv, V = visual.shape
    assert Bv == B and w1a.shape[0] == A and w1v.shape[0] == V
    O_p = w2p.shape[1]
    O = int(output_dim)
    cdtype = jnp.dtype(w1a.dtype)
    odtype = jnp.dtype(out_dtype) if out_dtype is not None else cdtype

    in_bytes = jnp.dtype(audio.dtype).itemsize
    c_bytes = cdtype.itemsize
    o_bytes = odtype.itemsize

    # ---- batch tile: big enough to amortize grid-step overhead (~2 MiB/step),
    # ---- but >=2 tiles when there is enough batch for v7x's two TensorCores.
    row_bytes = (A + V) * in_bytes + O_p * o_bytes
    target_rows = _round_up(max(8, -(-2 * 1024 * 1024 // row_bytes)), 8)
    TB = target_rows
    if block_b is not None:
        TB = min(TB, _round_up(int(block_b), 8))
    TB = min(TB, _round_up(B, 8))
    MIN_SPLIT_ROWS = 512
    if B >= 2 * MIN_SPLIT_ROWS and pl.cdiv(B, TB) < 2:
        TB = _round_up(pl.cdiv(B, 2), 8)

    # ---- VMEM accounting: resident weights + double-buffered I/O tiles +
    # ---- f32 hidden intermediate (and its compute-dtype copy for matmul 2).
    weight_bytes = (A + V + O_p) * O_p * c_bytes + 2 * O_p * 4

    def tile_vmem_bytes(tb):
        return 2 * tb * ((A + V) * in_bytes + O_p * o_bytes) + tb * O_p * (4 + c_bytes)

    budget = _vmem_budget_bytes()
    if weight_bytes > (budget * 3) // 4:
        # TODO(synk): tiled-weight fallback (grid over O_p + accumulator scratch).
        raise NotImplementedError(
            f"resident weights ({weight_bytes} B) exceed the VMEM budget "
            f"({budget} B) on this chip; tiled fallback not implemented.")
    while TB > 8 and weight_bytes + tile_vmem_bytes(TB) > budget:
        TB = max(8, _round_up(TB // 2, 8))

    grid_b = pl.cdiv(B, TB)
    needed = weight_bytes + tile_vmem_bytes(TB)
    vmem_limit = int(min(budget, max(32 * 1024 * 1024, (needed * 5) // 4 + (2 << 20))))

    cost = pl.CostEstimate(
        flops=2 * B * (A + V) * O_p + 2 * B * O_p * O_p,
        transcendentals=0,
        bytes_accessed=B * (A + V) * in_bytes + weight_bytes + B * O_p * o_bytes,
    )

    out = pl.pallas_call(
        _fusion_kernel,
        out_shape=jax.ShapeDtypeStruct((B, O_p), odtype),
        grid=(grid_b,),
        in_specs=[
            pl.BlockSpec((TB, A), lambda i: (i, 0)),      # audio tile (pipelined)
            pl.BlockSpec((TB, V), lambda i: (i, 0)),      # visual tile (pipelined)
            pl.BlockSpec((A, O_p), lambda i: (0, 0)),     # w1 audio half (resident)
            pl.BlockSpec((V, O_p), lambda i: (0, 0)),     # w1 visual half (resident)
            pl.BlockSpec((1, O_p), lambda i: (0, 0)),     # b1 (resident, f32)
            pl.BlockSpec((O_p, O_p), lambda i: (0, 0)),   # w2 (resident)
            pl.BlockSpec((1, O_p), lambda i: (0, 0)),     # b2 (resident, f32)
        ],
        out_specs=pl.BlockSpec((TB, O_p), lambda i: (i, 0)),
        compiler_params=pltpu.CompilerParams(
            dimension_semantics=("parallel",),            # megacore sharding on v7x
            vmem_limit_bytes=vmem_limit,
        ),
        cost_estimate=cost,
    )(audio, visual, w1a, w1v, b1p, w2p, b2p)

    return out if O_p == O else out[:, :O]


def audio_visual_fusion(audio, visual, w1, b1, w2, b2, *,
                        compute_dtype=jnp.bfloat16, out_dtype=None, block_b=None):
    """Convenience wrapper: prepares weights and runs the fused kernel.
    For repeated calls, use prepare_fusion_params() once + fused_forward()."""
    A = audio.shape[1]
    O = w1.shape[1]
    params = prepare_fusion_params(w1, b1, w2, b2, A, compute_dtype=compute_dtype)
    return fused_forward(audio, visual, params, output_dim=O,
                         out_dtype=out_dtype, block_b=block_b)


if __name__ == "__main__":
    # Small shapes consistent with the module.
    batch = 8
    audio_dim = 16
    visual_dim = 16
    output_dim = 32

    key = jax.random.PRNGKey(0)
    k_a, k_v, k_w1, k_b1, k_w2, k_b2 = jax.random.split(key, 6)

    audio = jax.random.normal(k_a, (batch, audio_dim), dtype=jnp.float32)
    visual = jax.random.normal(k_v, (batch, visual_dim), dtype=jnp.float32)

    # PyTorch Linear weights are (out, in); stored here already transposed to
    # (in, out) so the kernel computes x @ W + b.
    in1 = audio_dim + visual_dim
    w1 = jax.random.normal(k_w1, (in1, output_dim), dtype=jnp.float32) * 0.1
    b1 = jax.random.normal(k_b1, (output_dim,), dtype=jnp.float32) * 0.1
    w2 = jax.random.normal(k_w2, (output_dim, output_dim), dtype=jnp.float32) * 0.1
    b2 = jax.random.normal(k_b2, (output_dim,), dtype=jnp.float32) * 0.1

    # Plain-JAX reference (same math as the PyTorch module).
    combined = jnp.concatenate([audio, visual], axis=1)
    ref = jnp.maximum(combined @ w1 + b1, 0.0) @ w2 + b2

    # 1) f32 datapath: tight check (convenience wrapper).
    out_f32 = jax.block_until_ready(
        audio_visual_fusion(audio, visual, w1, b1, w2, b2,
                            compute_dtype=jnp.float32, out_dtype=jnp.float32))
    assert out_f32.shape == (batch, output_dim)
    assert jnp.allclose(out_f32, ref, atol=1e-5, rtol=1e-5)

    # 2) default bf16 MXU datapath (f32 accumulation): weights prepared once,
    #    hot path jitted -- no per-call weight pad/cast ops.
    params = prepare_fusion_params(w1, b1, w2, b2, audio_dim)   # bf16 by default
    fwd = jax.jit(functools.partial(fused_forward, output_dim=output_dim,
                                    out_dtype=jnp.float32))
    out_bf16 = jax.block_until_ready(fwd(audio, visual, params))
    assert out_bf16.shape == (batch, output_dim)
    assert jnp.allclose(out_bf16, ref, atol=5e-2, rtol=5e-2)

    print("KERNEL_OK")
</pallas_src>

<mosaic_0001>
module attributes {stable_mosaic.version = 11 : i64} {
  func.func @_fusion_kernel(%arg0: i32, %arg1: memref<8x16xf32, #tpu.memory_space<vmem>>, %arg2: memref<8x16xf32, #tpu.memory_space<vmem>>, %arg3: memref<16x128xf32, #tpu.memory_space<vmem>>, %arg4: memref<16x128xf32, #tpu.memory_space<vmem>>, %arg5: memref<1x128xf32, #tpu.memory_space<vmem>>, %arg6: memref<128x128xf32, #tpu.memory_space<vmem>>, %arg7: memref<1x128xf32, #tpu.memory_space<vmem>>, %arg8: memref<8x128xf32, #tpu.memory_space<vmem>>) attributes {dimension_semantics = [#tpu.dimension_semantics<parallel>], iteration_bounds = array<i64: 1>, scalar_prefetch = 0 : i64, scratch_operands = 0 : i64, tpu.core_type = #tpu.core_type<tc>, window_params = [{transform_indices = @transform_0, window_bounds = array<i64: 8, 16>}, {transform_indices = @transform_1, window_bounds = array<i64: 8, 16>}, {pipeline_mode = #tpu.pipeline_mode<synchronous>, transform_indices = @transform_2, window_bounds = array<i64: 16, 128>}, {pipeline_mode = #tpu.pipeline_mode<synchronous>, transform_indices = @transform_3, window_bounds = array<i64: 16, 128>}, {pipeline_mode = #tpu.pipeline_mode<synchronous>, transform_indices = @transform_4, window_bounds = array<i64: 1, 128>}, {pipeline_mode = #tpu.pipeline_mode<synchronous>, transform_indices = @transform_5, window_bounds = array<i64: 128, 128>}, {pipeline_mode = #tpu.pipeline_mode<synchronous>, transform_indices = @transform_6, window_bounds = array<i64: 1, 128>}, {transform_indices = @transform_7, window_bounds = array<i64: 8, 128>}]} {
    %c0 = arith.constant 0 : index
    %c0_0 = arith.constant 0 : index
    %0 = vector.load %arg1[%c0, %c0_0] : memref<8x16xf32, #tpu.memory_space<vmem>>, vector<8x16xf32>
    %c0_1 = arith.constant 0 : index
    %c0_2 = arith.constant 0 : index
    %1 = vector.load %arg2[%c0_1, %c0_2] : memref<8x16xf32, #tpu.memory_space<vmem>>, vector<8x16xf32>
    %c0_3 = arith.constant 0 : index
    %c0_4 = arith.constant 0 : index
    %2 = vector.load %arg3[%c0_3, %c0_4] : memref<16x128xf32, #tpu.memory_space<vmem>>, vector<16x128xf32>
    %cst = arith.constant dense<0.000000e+00> : vector<8x128xf32>
    %3 = tpu.matmul %0, %2, %cst {dimension_numbers = #tpu.dot_dimension_numbers<[1], [0], [0], [1], [0, 0, 1, 1], [], []>} : vector<8x16xf32>, vector<16x128xf32>, vector<8x128xf32> -> vector<8x128xf32>
    %c0_5 = arith.constant 0 : index
    %c0_6 = arith.constant 0 : index
    %4 = vector.load %arg4[%c0_5, %c0_6] : memref<16x128xf32, #tpu.memory_space<vmem>>, vector<16x128xf32>
    %cst_7 = arith.constant dense<0.000000e+00> : vector<8x128xf32>
    %5 = tpu.matmul %1, %4, %cst_7 {dimension_numbers = #tpu.dot_dimension_numbers<[1], [0], [0], [1], [0, 0, 1, 1], [], []>} : vector<8x16xf32>, vector<16x128xf32>, vector<8x128xf32> -> vector<8x128xf32>
    %6 = arith.addf %3, %5 : vector<8x128xf32>
    %c0_8 = arith.constant 0 : index
    %c0_9 = arith.constant 0 : index
    %7 = vector.load %arg5[%c0_8, %c0_9] : memref<1x128xf32, #tpu.memory_space<vmem>>, vector<1x128xf32>
    %8 = vector.broadcast %7 : vector<1x128xf32> to vector<8x128xf32>
    %9 = arith.addf %6, %8 : vector<8x128xf32>
    %cst_10 = arith.constant 0.000000e+00 : f32
    %10 = vector.broadcast %cst_10 : f32 to vector<8x128xf32>
    %11 = arith.maximumf %9, %10 : vector<8x128xf32>
    %c0_11 = arith.constant 0 : index
    %c0_12 = arith.constant 0 : index
    %12 = vector.load %arg6[%c0_11, %c0_12] : memref<128x128xf32, #tpu.memory_space<vmem>>, vector<128x128xf32>
    %cst_13 = arith.constant dense<0.000000e+00> : vector<8x128xf32>
    %13 = tpu.matmul %11, %12, %cst_13 {dimension_numbers = #tpu.dot_dimension_numbers<[1], [0], [0], [1], [0, 0, 1, 1], [], []>} : vector<8x128xf32>, vector<128x128xf32>, vector<8x128xf32> -> vector<8x128xf32>
    %c0_14 = arith.constant 0 : index
    %c0_15 = arith.constant 0 : index
    %14 = vector.load %arg7[%c0_14, %c0_15] : memref<1x128xf32, #tpu.memory_space<vmem>>, vector<1x128xf32>
    %15 = vector.broadcast %14 : vector<1x128xf32> to vector<8x128xf32>
    %16 = arith.addf %13, %15 : vector<8x128xf32>
    %c0_16 = arith.constant 0 : index
    %c0_17 = arith.constant 0 : index
    %17 = vector.load %arg8[%c0_16, %c0_17] : memref<8x128xf32, #tpu.memory_space<vmem>>, vector<8x128xf32>
    tpu.vector_store %arg8[%c0_16, %c0_17], %16 {strides = array<i32>} : memref<8x128xf32, #tpu.memory_space<vmem>>, vector<8x128xf32>,
    return
  }
  func.func @transform_0(%arg0: i32) -> (i32, i32) {
    %c0_i32 = arith.constant 0 : i32
    %c0_i32_0 = arith.constant 0 : i32
    return %arg0, %c0_i32 : i32, i32
  }
  func.func @transform_1(%arg0: i32) -> (i32, i32) {
    %c0_i32 = arith.constant 0 : i32
    %c0_i32_0 = arith.constant 0 : i32
    return %arg0, %c0_i32 : i32, i32
  }
  func.func @transform_2(%arg0: i32) -> (i32, i32) {
    %c0_i32 = arith.constant 0 : i32
    %c0_i32_0 = arith.constant 0 : i32
    %c0_i32_1 = arith.constant 0 : i32
    return %c0_i32, %c0_i32_0 : i32, i32
  }
  func.func @transform_3(%arg0: i32) -> (i32, i32) {
    %c0_i32 = arith.constant 0 : i32
    %c0_i32_0 = arith.constant 0 : i32
    %c0_i32_1 = arith.constant 0 : i32
    return %c0_i32, %c0_i32_0 : i32, i32
  }
  func.func @transform_4(%arg0: i32) -> (i32, i32) {
    %c0_i32 = arith.constant 0 : i32
    %c0_i32_0 = arith.constant 0 : i32
    %c0_i32_1 = arith.constant 0 : i32
    return %c0_i32, %c0_i32_0 : i32, i32
  }
  func.func @transform_5(%arg0: i32) -> (i32, i32) {
    %c0_i32 = arith.constant 0 : i32
    %c0_i32_0 = arith.constant 0 : i32
    %c0_i32_1 = arith.constant 0 : i32
    return %c0_i32, %c0_i32_0 : i32, i32
  }
  func.func @transform_6(%arg0: i32) -> (i32, i32) {
    %c0_i32 = arith.constant 0 : i32
    %c0_i32_0 = arith.constant 0 : i32
    %c0_i32_1 = arith.constant 0 : i32
    return %c0_i32, %c0_i32_0 : i32, i32
  }
  func.func @transform_7(%arg0: i32) -> (i32, i32) {
    %c0_i32 = arith.constant 0 : i32
    %c0_i32_0 = arith.constant 0 : i32
    return %arg0, %c0_i32 : i32, i32
  }
}

</mosaic_0001>

<llo_original>
// kernel: tpu_custom_call.1
$region0: #{tpu_custom_call.1}
  #allocation0 [shape = 'u32[]', space=smem, size = 0x4, offset = 0x4, fixed_abs, tag = 'smem constant byte address 0x4 - core index']
  #allocation1 [shape = 'u32[144,128]{1,0:T(1,128)}', space=vmem, size = 0x12000, scoped, tag = 'internal scratch']
  %s0 = inlined_call_operand.hbm [shape: f32[8,16], index: 0, kind: input, shape index: {}]
  %s1 = inlined_call_operand.hbm [shape: f32[8,16], index: 1, kind: input, shape index: {}]
  %s2 = inlined_call_operand.hbm [shape: f32[16,128], index: 2, kind: input, shape index: {}]
  %s3 = inlined_call_operand.hbm [shape: f32[16,128], index: 3, kind: input, shape index: {}]
  %s4 = inlined_call_operand.vmem [shape: f32[1,128], index: 4, kind: input, shape index: {}]
  %s5 = inlined_call_operand.hbm [shape: f32[128,128], index: 5, kind: input, shape index: {}]
  %s6 = inlined_call_operand.vmem [shape: f32[1,128], index: 6, kind: input, shape index: {}]
  %s7 = inlined_call_operand.hbm [shape: f32[8,128], index: 7, kind: output, shape index: {}]
  %s8 = sld [smem:[#allocation0]]
  $region58: #{tpu_custom_call.1} parent=0
    _
  %s10 = ssub.s32 1, %s8
  %s11 = scalar_select 0, %s10, %s8
  $region1: #{tpu_custom_call.1} parent=0
    #allocation2 [shape = 'u8[4096]{0}', space=vmem, size = 0x1000, scoped, tag = 'input window, operand 0, single buffered']
    #allocation3 [shape = 's32[1]{0}', space=sflag, size = 0x4, scoped, tag = 'scoped memory for tpu_custom_call.1']
    #allocation4 [shape = 's32[1]{0}', space=sflag, size = 0x4, scoped, tag = 'scoped memory for tpu_custom_call.1']
    #allocation5 [shape = 'u8[4096]{0}', space=vmem, size = 0x1000, scoped, tag = 'input window, operand 1, single buffered']
    #allocation6 [shape = 's32[1]{0}', space=sflag, size = 0x4, scoped, tag = 'scoped memory for tpu_custom_call.1']
    #allocation7 [shape = 'u8[8192]{0}', space=vmem, size = 0x2000, scoped, tag = 'input window, operand 2, single buffered']
    #allocation8 [shape = 'u8[8192]{0}', space=vmem, size = 0x2000, scoped, tag = 'input window, operand 3, single buffered']
    #allocation9 [shape = 's32[1]{0}', space=sflag, size = 0x4, scoped, tag = 'scoped memory for tpu_custom_call.1']
    #allocation10 [shape = 'u8[65536]{0}', space=vmem, size = 0x10000, scoped, tag = 'input window, operand 5, single buffered']
    #allocation11 [shape = 'u8[4096]{0}', space=vmem, size = 0x1000, scoped, tag = 'output window, operand 0, single buffered']
    %12 = vsyncpa [#allocation3], 0
    %13 = vsyncpa [#allocation6], 0
    %14 = vsyncpa [#allocation9], 0
    %15 = vsyncpa [#allocation4], 0
    // Predicated region
    $region2: #{tpu_custom_call.1} parent=1 // pred_check
      _
    $region3: #{tpu_custom_call.1} parent=1 // pred_check_branch
      %17 = sbr.rel (0) target = $region5
    $region4: #{tpu_custom_call.1} parent=1 // pred_region
      %s19 = ssub.s32 128, 128
      %20 = vsyncadd [#allocation3], %s19
      %s22 = sshll.u32 [#allocation2], 4
      %s23 = int_to_ptr.vmem [resolvable:$true] %s22
      %25 = dma.hbm_to_vmem [thread:$0]  %s0, 128, %s23, [#allocation3]
    $region5: #{tpu_custom_call.1} parent=1 // pred_fallthru
      _
    // Predicated region
    $region6: #{tpu_custom_call.1} parent=1 // pred_check
      _
    $region7: #{tpu_custom_call.1} parent=1 // pred_check_branch
      %27 = sbr.rel (0) target = $region9
    $region8: #{tpu_custom_call.1} parent=1 // pred_region
      %s29 = ssub.s32 128, 128
      %30 = vsyncadd [#allocation6], %s29
      %s32 = sshll.u32 [#allocation5], 4
      %s33 = int_to_ptr.vmem [resolvable:$true] %s32
      %35 = dma.hbm_to_vmem [thread:$0]  %s1, 128, %s33, [#allocation6]
    $region9: #{tpu_custom_call.1} parent=1 // pred_fallthru
      _
    // Predicated region
    $region10: #{tpu_custom_call.1} parent=1 // pred_check
      _
    $region11: #{tpu_custom_call.1} parent=1 // pred_check_branch
      %37 = sbr.rel (0) target = $region13
    $region12: #{tpu_custom_call.1} parent=1 // pred_region
      %s39 = ssub.s32 256, 256
      %40 = vsyncadd [#allocation6], %s39
      %s41 = sshll.u32 [#allocation7], 4
      %s42 = int_to_ptr.vmem [resolvable:$true] %s41
      %47 = dma.hbm_to_vmem [thread:$0]  %s2, 256, %s42, [#allocation6], 128, 128, 8
    $region13: #{tpu_custom_call.1} parent=1 // pred_fallthru
      _
    // Predicated region
    $region14: #{tpu_custom_call.1} parent=1 // pred_check
      _
    $region15: #{tpu_custom_call.1} parent=1 // pred_check_branch
      %49 = sbr.rel (0) target = $region17
    $region16: #{tpu_custom_call.1} parent=1 // pred_region
      %s51 = ssub.s32 256, 256
      %52 = vsyncadd [#allocation9], %s51
      %s53 = sshll.u32 [#allocation8], 4
      %s54 = int_to_ptr.vmem [resolvable:$true] %s53
      %59 = dma.hbm_to_vmem [thread:$0]  %s3, 256, %s54, [#allocation9], 128, 128, 8
    $region17: #{tpu_custom_call.1} parent=1 // pred_fallthru
      _
    // Predicated region
    $region18: #{tpu_custom_call.1} parent=1 // pred_check
      _
    $region19: #{tpu_custom_call.1} parent=1 // pred_check_branch
      %61 = sbr.rel (0) target = $region21
    $region20: #{tpu_custom_call.1} parent=1 // pred_region
      _
    $region21: #{tpu_custom_call.1} parent=1 // pred_fallthru
      _
    // Predicated region
    $region22: #{tpu_custom_call.1} parent=1 // pred_check
      _
    $region23: #{tpu_custom_call.1} parent=1 // pred_check_branch
      %63 = sbr.rel (0) target = $region25
    $region24: #{tpu_custom_call.1} parent=1 // pred_region
      %s65 = ssub.s32 2048, 2048
      %66 = vsyncadd [#allocation9], %s65
      %s67 = sshll.u32 [#allocation10], 4
      %s68 = int_to_ptr.vmem [resolvable:$true] %s67
      %73 = dma.hbm_to_vmem [thread:$0]  %s5, 2048, %s68, [#allocation9], 128, 128, 8
    $region25: #{tpu_custom_call.1} parent=1 // pred_fallthru
      _
    // Predicated region
    $region26: #{tpu_custom_call.1} parent=1 // pred_check
      _
    $region27: #{tpu_custom_call.1} parent=1 // pred_check_branch
      %75 = sbr.rel (0) target = $region29
    $region28: #{tpu_custom_call.1} parent=1 // pred_region
      _
    $region29: #{tpu_custom_call.1} parent=1 // pred_fallthru
      _
    // Predicated region
    $region30: #{tpu_custom_call.1} parent=1 // pred_check
      _
    $region31: #{tpu_custom_call.1} parent=1 // pred_check_branch
      %77 = sbr.rel (0) target = $region33
    $region32: #{tpu_custom_call.1} parent=1 // pred_region
      %78 = dma.done [#allocation3], 128
    $region33: #{tpu_custom_call.1} parent=1 // pred_fallthru
      _
    // Predicated region
    $region34: #{tpu_custom_call.1} parent=1 // pred_check
      _
    $region35: #{tpu_custom_call.1} parent=1 // pred_check_branch
      %80 = sbr.rel (0) target = $region37
    $region36: #{tpu_custom_call.1} parent=1 // pred_region
      %81 = dma.done [#allocation6], 128
    $region37: #{tpu_custom_call.1} parent=1 // pred_fallthru
      _
    // Predicated region
    $region38: #{tpu_custom_call.1} parent=1 // pred_check
      _
    $region39: #{tpu_custom_call.1} parent=1 // pred_check_branch
      %83 = sbr.rel (0) target = $region41
    $region40: #{tpu_custom_call.1} parent=1 // pred_region
      %84 = dma.done [#allocation6], 256
    $region41: #{tpu_custom_call.1} parent=1 // pred_fallthru
      _
    // Predicated region
    $region42: #{tpu_custom_call.1} parent=1 // pred_check
      _
    $region43: #{tpu_custom_call.1} parent=1 // pred_check_branch
      %86 = sbr.rel (0) target = $region45
    $region44: #{tpu_custom_call.1} parent=1 // pred_region
      %87 = dma.done [#allocation9], 256
    $region45: #{tpu_custom_call.1} parent=1 // pred_fallthru
      _
    // Predicated region
    $region46: #{tpu_custom_call.1} parent=1 // pred_check
      _
    $region47: #{tpu_custom_call.1} parent=1 // pred_check_branch
      %89 = sbr.rel (0) target = $region49
    $region48: #{tpu_custom_call.1} parent=1 // pred_region
      %90 = dma.done [#allocation9], 2048
    $region49: #{tpu_custom_call.1} parent=1 // pred_fallthru
      _
    %v91 = vld [vmem:[#allocation2] sm:$0xff]
    %v92 = vld [vmem:[#allocation5] sm:$0xff]
    %v93 = vld [vmem:[#allocation7] sm:$0xff]
    %v94 = vld [vmem:[#allocation7 + $0x8] sm:$0xff]
    %v95 = vld [vmem:[#allocation8] sm:$0xff]
    %v96 = vld [vmem:[#allocation8 + $0x8] sm:$0xff]
    %vm97 = vcmask 130048
    %v99 = vsel %vm97, %v92, 0
    %101 = vmatprep.subr.mxu0 0.0
    %102 = vmatpush1.msra.mxu0 %v95
    %103 = vmatprep.subr.mxu0 0.0
    %104 = vmatpush1.msra.mxu0 %v96
    %105 = vmatprep.subr.mxu0 0.0
    %106 = vmatpush1.msra.mxu0 0.0
    %107 = vmatprep.subr.mxu0 0.0
    %108 = vmatpush1.msra.mxu0 0.0
    %109 = vmatprep.subr.mxu0 0.0
    %110 = vmatpush1.msra.mxu0 0.0
    %111 = vmatprep.subr.mxu0 0.0
    %112 = vmatpush1.msra.mxu0 0.0
    %113 = vmatprep.subr.mxu0 0.0
    %114 = vmatpush1.msra.mxu0 0.0
    %115 = vmatprep.subr.mxu0 0.0
    %116 = vmatpush1.msra.mxu0 0.0
    %117 = vmatprep.subr.mxu0 0.0
    %118 = vmatpush1.msra.mxu0 0.0
    %119 = vmatprep.subr.mxu0 0.0
    %120 = vmatpush1.msra.mxu0 0.0
    %121 = vmatprep.subr.mxu0 0.0
    %122 = vmatpush1.msra.mxu0 0.0
    %123 = vmatprep.subr.mxu0 0.0
    %124 = vmatpush1.msra.mxu0 0.0
    %125 = vmatprep.subr.mxu0 0.0
    %126 = vmatpush1.msra.mxu0 0.0
    %127 = vmatprep.subr.mxu0 0.0
    %128 = vmatpush1.msra.mxu0 0.0
    %129 = vmatprep.subr.mxu0 0.0
    %130 = vmatpush1.msra.mxu0 0.0
    %131 = vmatprep.subr.mxu0 0.0
    %132 = vmatpush1.msra.mxu0 0.0
    %133 = vmatprep.subr.mxu0 0.0
    %134 = vmatpush1.msra.mxu0 0.0
    %135 = vmatprep.subr.mxu0 0.0
    %136 = vmatpush1.msra.mxu0 0.0
    %137 = vmatprep.subr.mxu0 0.0
    %138 = vmatpush1.msra.mxu0 0.0
    %139 = vmatprep.subr.mxu0 0.0
    %140 = vmatpush1.msra.mxu0 0.0
    %141 = vmatprep.subr.mxu0 0.0
    %142 = vmatpush1.msra.mxu0 0.0
    %143 = vmatprep.subr.mxu0 0.0
    %144 = vmatpush1.msra.mxu0 0.0
    %145 = vmatprep.subr.mxu0 0.0
    %146 = vmatpush1.msra.mxu0 0.0
    %147 = vmatprep.subr.mxu0 0.0
    %148 = vmatpush1.msra.mxu0 0.0
    %149 = vmatprep.subr.mxu0 0.0
    %150 = vmatpush1.msra.mxu0 0.0
    %151 = vmatprep.subr.mxu0 0.0
    %152 = vmatpush1.msra.mxu0 0.0
    %153 = vmatprep.subr.mxu0 0.0
    %154 = vmatpush1.msra.mxu0 0.0
    %155 = vmatprep.subr.mxu0 0.0
    %156 = vmatpush1.msra.mxu0 0.0
    %157 = vmatprep.subr.mxu0 0.0
    %158 = vmatpush1.msra.mxu0 0.0
    %159 = vmatprep.subr.mxu0 0.0
    %160 = vmatpush1.msra.mxu0 0.0
    %161 = vmatprep.subr.mxu0 0.0
    %162 = vmatpush1.msra.mxu0 0.0
    %163 = vmatprep.subr.mxu0 0.0
    %164 = vmatpush1.msra.mxu0 0.0
    %165 = vmatprep.mubr.f32.mxu0 0.0
    %166 = vmatmul.mubr.f32.gmra.mrb[0].mxu0 %v99
    %v167 = vpop.f32.mrb[0].mxu0
    %v168 = vadd.f32 0.0, %v167
    %v169 = vpop.f32.mrb[0].mxu0
    %170 = vdwg.mxu0
    %v172 = vsel %vm97, %v91, 0
    %174 = vmatprep.subr.mxu0 0.0
    %175 = vmatpush1.msra.mxu0 %v93
    %176 = vmatprep.subr.mxu0 0.0
    %177 = vmatpush1.msra.mxu0 %v94
    %178 = vmatprep.subr.mxu0 0.0
    %179 = vmatpush1.msra.mxu0 0.0
    %180 = vmatprep.subr.mxu0 0.0
    %181 = vmatpush1.msra.mxu0 0.0
    %182 = vmatprep.subr.mxu0 0.0
    %183 = vmatpush1.msra.mxu0 0.0
    %184 = vmatprep.subr.mxu0 0.0
    %185 = vmatpush1.msra.mxu0 0.0
    %186 = vmatprep.subr.mxu0 0.0
    %187 = vmatpush1.msra.mxu0 0.0
    %188 = vmatprep.subr.mxu0 0.0
    %189 = vmatpush1.msra.mxu0 0.0
    %190 = vmatprep.subr.mxu0 0.0
    %191 = vmatpush1.msra.mxu0 0.0
    %192 = vmatprep.subr.mxu0 0.0
    %193 = vmatpush1.msra.mxu0 0.0
    %194 = vmatprep.subr.mxu0 0.0
    %195 = vmatpush1.msra.mxu0 0.0
    %196 = vmatprep.subr.mxu0 0.0
    %197 = vmatpush1.msra.mxu0 0.0
    %198 = vmatprep.subr.mxu0 0.0
    %199 = vmatpush1.msra.mxu0 0.0
    %200 = vmatprep.subr.mxu0 0.0
    %201 = vmatpush1.msra.mxu0 0.0
    %202 = vmatprep.subr.mxu0 0.0
    %203 = vmatpush1.msra.mxu0 0.0
    %204 = vmatprep.subr.mxu0 0.0
    %205 = vmatpush1.msra.mxu0 0.0
    %206 = vmatprep.subr.mxu0 0.0
    %207 = vmatpush1.msra.mxu0 0.0
    %208 = vmatprep.subr.mxu0 0.0
    %209 = vmatpush1.msra.mxu0 0.0
    %210 = vmatprep.subr.mxu0 0.0
    %211 = vmatpush1.msra.mxu0 0.0
    %212 = vmatprep.subr.mxu0 0.0
    %213 = vmatpush1.msra.mxu0 0.0
    %214 = vmatprep.subr.mxu0 0.0
    %215 = vmatpush1.msra.mxu0 0.0
    %216 = vmatprep.subr.mxu0 0.0
    %217 = vmatpush1.msra.mxu0 0.0
    %218 = vmatprep.subr.mxu0 0.0
    %219 = vmatpush1.msra.mxu0 0.0
    %220 = vmatprep.subr.mxu0 0.0
    %221 = vmatpush1.msra.mxu0 0.0
    %222 = vmatprep.subr.mxu0 0.0
    %223 = vmatpush1.msra.mxu0 0.0
    %224 = vmatprep.subr.mxu0 0.0
    %225 = vmatpush1.msra.mxu0 0.0
    %226 = vmatprep.subr.mxu0 0.0
    %227 = vmatpush1.msra.mxu0 0.0
    %228 = vmatprep.subr.mxu0 0.0
    %229 = vmatpush1.msra.mxu0 0.0
    %230 = vmatprep.subr.mxu0 0.0
    %231 = vmatpush1.msra.mxu0 0.0
    %232 = vmatprep.subr.mxu0 0.0
    %233 = vmatpush1.msra.mxu0 0.0
    %234 = vmatprep.subr.mxu0 0.0
    %235 = vmatpush1.msra.mxu0 0.0
    %236 = vmatprep.subr.mxu0 0.0
    %237 = vmatpush1.msra.mxu0 0.0
    %238 = vmatprep.mubr.f32.mxu0 0.0
    %239 = vmatmul.mubr.f32.gmra.mrb[0].mxu0 %v172
    %v240 = vpop.f32.mrb[0].mxu0
    %v241 = vadd.f32 %v168, %v240
    %v242 = vpop.f32.mrb[0].mxu0
    %243 = vdwg.mxu0
    %v244 = vld [vmem:[%s4] sm:$0x1]
    %v246 = vlaneseq
    %v247 = vshrl.u32 %v246, 7
    %v248 = vsub.s32 0, %v247
    %v249 = vrot.slane %v244, %v248
    %v251 = vadd.f32 %v241, %v249
    %v252 = vmax.f32 %v251, 0.0
    %v253 = vld [vmem:[#allocation10] sm:$0xff]
    %v254 = vld [vmem:[#allocation10 + $0x8] sm:$0xff]
    %v255 = vld [vmem:[#allocation10 + $0x10] sm:$0xff]
    %v256 = vld [vmem:[#allocation10 + $0x18] sm:$0xff]
    %v257 = vld [vmem:[#allocation10 + $0x20] sm:$0xff]
    %v258 = vld [vmem:[#allocation10 + $0x28] sm:$0xff]
    %v259 = vld [vmem:[#allocation10 + $0x30] sm:$0xff]
    %v260 = vld [vmem:[#allocation10 + $0x38] sm:$0xff]
    %v261 = vld [vmem:[#allocation10 + $0x40] sm:$0xff]
    %v262 = vld [vmem:[#allocation10 + $0x48] sm:$0xff]
    %v263 = vld [vmem:[#allocation10 + $0x50] sm:$0xff]
    %v264 = vld [vmem:[#allocation10 + $0x58] sm:$0xff]
    %v265 = vld [vmem:[#allocation10 + $0x60] sm:$0xff]
    %v266 = vld [vmem:[#allocation10 + $0x68] sm:$0xff]
    %v267 = vld [vmem:[#allocation10 + $0x70] sm:$0xff]
    %v268 = vld [vmem:[#allocation10 + $0x78] sm:$0xff]
    %v269 = vld [vmem:[%s6] sm:$0x1]
    %v271 = vlaneseq
    %v272 = vshrl.u32 %v271, 7
    %v273 = vsub.s32 0, %v272
    %v274 = vrot.slane %v269, %v273
    %276 = vmatprep.subr.mxu0 0.0
    %277 = vmatpush1.msra.mxu0 %v253
    %278 = vmatprep.subr.mxu0 0.0
    %279 = vmatpush1.msra.mxu0 %v254
    %280 = vmatprep.subr.mxu0 0.0
    %281 = vmatpush1.msra.mxu0 %v255
    %282 = vmatprep.subr.mxu0 0.0
    %283 = vmatpush1.msra.mxu0 %v256
    %284 = vmatprep.subr.mxu0 0.0
    %285 = vmatpush1.msra.mxu0 %v257
    %286 = vmatprep.subr.mxu0 0.0
    %287 = vmatpush1.msra.mxu0 %v258
    %288 = vmatprep.subr.mxu0 0.0
    %289 = vmatpush1.msra.mxu0 %v259
    %290 = vmatprep.subr.mxu0 0.0
    %291 = vmatpush1.msra.mxu0 %v260
    %292 = vmatprep.subr.mxu0 0.0
    %293 = vmatpush1.msra.mxu0 %v261
    %294 = vmatprep.subr.mxu0 0.0
    %295 = vmatpush1.msra.mxu0 %v262
    %296 = vmatprep.subr.mxu0 0.0
    %297 = vmatpush1.msra.mxu0 %v263
    %298 = vmatprep.subr.mxu0 0.0
    %299 = vmatpush1.msra.mxu0 %v264
    %300 = vmatprep.subr.mxu0 0.0
    %301 = vmatpush1.msra.mxu0 %v265
    %302 = vmatprep.subr.mxu0 0.0
    %303 = vmatpush1.msra.mxu0 %v266
    %304 = vmatprep.subr.mxu0 0.0
    %305 = vmatpush1.msra.mxu0 %v267
    %306 = vmatprep.subr.mxu0 0.0
    %307 = vmatpush1.msra.mxu0 %v268
    %308 = vmatprep.subr.mxu0 0.0
    %309 = vmatpush1.msra.mxu0 0.0
    %310 = vmatprep.subr.mxu0 0.0
    %311 = vmatpush1.msra.mxu0 0.0
    %312 = vmatprep.subr.mxu0 0.0
    %313 = vmatpush1.msra.mxu0 0.0
    %314 = vmatprep.subr.mxu0 0.0
    %315 = vmatpush1.msra.mxu0 0.0
    %316 = vmatprep.subr.mxu0 0.0
    %317 = vmatpush1.msra.mxu0 0.0
    %318 = vmatprep.subr.mxu0 0.0
    %319 = vmatpush1.msra.mxu0 0.0
    %320 = vmatprep.subr.mxu0 0.0
    %321 = vmatpush1.msra.mxu0 0.0
    %322 = vmatprep.subr.mxu0 0.0
    %323 = vmatpush1.msra.mxu0 0.0
    %324 = vmatprep.subr.mxu0 0.0
    %325 = vmatpush1.msra.mxu0 0.0
    %326 = vmatprep.subr.mxu0 0.0
    %327 = vmatpush1.msra.mxu0 0.0
    %328 = vmatprep.subr.mxu0 0.0
    %329 = vmatpush1.msra.mxu0 0.0
    %330 = vmatprep.subr.mxu0 0.0
    %331 = vmatpush1.msra.mxu0 0.0
    %332 = vmatprep.subr.mxu0 0.0
    %333 = vmatpush1.msra.mxu0 0.0
    %334 = vmatprep.subr.mxu0 0.0
    %335 = vmatpush1.msra.mxu0 0.0
    %336 = vmatprep.subr.mxu0 0.0
    %337 = vmatpush1.msra.mxu0 0.0
    %338 = vmatprep.subr.mxu0 0.0
    %339 = vmatpush1.msra.mxu0 0.0
    %340 = vmatprep.mubr.f32.mxu0 0.0
    %341 = vmatmul.mubr.f32.gmra.mrb[0].mxu0 %v252
    %v342 = vpop.f32.mrb[0].mxu0
    %v343 = vadd.f32 %v274, %v342
    %v344 = vpop.f32.mrb[0].mxu0
    %345 = vdwg.mxu0
    %346 = vst [vmem:[#allocation11] sm:$0xff] %v343
    // Predicated region
    $region50: #{tpu_custom_call.1} parent=1 // pred_check
      _
    $region51: #{tpu_custom_call.1} parent=1 // pred_check_branch
      %348 = sbr.rel (0) target = $region53
    $region52: #{tpu_custom_call.1} parent=1 // pred_region
      %s350 = ssub.s32 128, 128
      %351 = vsyncadd [#allocation4], %s350
      %s353 = sshll.u32 [#allocation11], 4
      %s354 = int_to_ptr.vmem [resolvable:$true] %s353
      %356 = dma.vmem_to_hbm [thread:$0]  %s354, 128, %s7, [#allocation4]
    $region53: #{tpu_custom_call.1} parent=1 // pred_fallthru
      _
    // Predicated region
    $region54: #{tpu_custom_call.1} parent=1 // pred_check
      _
    $region55: #{tpu_custom_call.1} parent=1 // pred_check_branch
      %358 = sbr.rel (0) target = $region57
    $region56: #{tpu_custom_call.1} parent=1 // pred_region
      %359 = dma.done [#allocation4], 128
    $region57: #{tpu_custom_call.1} parent=1 // pred_fallthru
      _
    %360 = vsyncpa [#allocation3], 1
    %361 = vsyncpa [#allocation6], 1
    %362 = vsyncpa [#allocation9], 1
    %363 = vsyncpa [#allocation4], 1

</llo_original>
